<compile_context>
chip_gen: v7x
topology: tpu7x:2x2x1
jax: 0.10.0
libtpu: 0.0.40
codegen_flags: <defaults>
</compile_context>

<pallas_src>
import functools

import numpy as np
import jax
import jax.numpy as jnp
from jax import lax
from jax.experimental import pallas as pl
from jax.experimental.pallas import tpu as pltpu

TK_MAX = 4096   # max contraction-axis tile
TM_MAX = 1024   # max output-row (M) tile (safe for v7x's 64 MiB per-core VMEM)


def _round_up(x, m):
    return ((x + m - 1) // m) * m


def _choose_tm(m):
    """Pick the M tile: big (amortize weight streaming) but >=2 tiles when the
    problem allows it so both v7x TensorCores get work."""
    m16 = _round_up(m, 16)
    if m16 <= 256:
        return m16
    return min(TM_MAX, _round_up((m16 + 1) // 2, 16))


# ----------------------------- Pallas kernels ------------------------------

def conv_mm_kernel(p_ref, w_ref, b_ref, o_ref, acc_ref, *,
                   nk, k_rem, apply_relu, pool_width):
    """acc[tm,N] += p[tm,tk] @ w[tk,N]; last K step: +bias (+ReLU) (+1x3 pool),
    then a SINGLE bf16 store into the output block.

    p/w are bf16, accumulation is f32 in a VMEM scratch.  The patch matrix is
    NOT padded in HBM: if the final K tile is ragged (k_rem is a python int)
    its out-of-range lanes are zeroed in-kernel before the matmul so garbage
    read past the array end cannot poison the accumulator (the padded weight
    rows are already zero).  When pool_width is not None the conv output
    height is 1, the single M tile holds the whole output row, and the output
    block has exactly pool_width-2 rows (the MaxPool2d((1,3),1) result).
    """
    kk = pl.program_id(1)

    @pl.when(kk == 0)
    def _init():
        acc_ref[...] = jnp.zeros_like(acc_ref)

    if k_rem is None:
        acc_ref[...] += jnp.dot(p_ref[...], w_ref[...],
                                preferred_element_type=jnp.float32)
    else:
        @pl.when(kk != nk - 1)
        def _full_step():
            acc_ref[...] += jnp.dot(p_ref[...], w_ref[...],
                                    preferred_element_type=jnp.float32)

        @pl.when(kk == nk - 1)
        def _ragged_step():
            p = p_ref[...]
            lane = lax.broadcasted_iota(jnp.int32, p.shape, 1)
            p = jnp.where(lane < k_rem, p, jnp.zeros_like(p))
            acc_ref[...] += jnp.dot(p, w_ref[...],
                                    preferred_element_type=jnp.float32)

    @pl.when(kk == nk - 1)
    def _epilogue():
        r = acc_ref[...] + b_ref[...]
        if apply_relu:
            r = jnp.maximum(r, 0.0)
        if pool_width is not None:
            pw = pool_width - 2
            r = jnp.maximum(jnp.maximum(r[0:pw], r[1:pw + 1]), r[2:pw + 2])
        o_ref[...] = r.astype(o_ref.dtype)          # single store


def maxpool_1x3_kernel(x_ref, o_ref):
    # Fallback standalone MaxPool2d((1,3), stride=1), tiled over rows.
    x = x_ref[...]
    w = x.shape[-1]
    o_ref[...] = jnp.maximum(jnp.maximum(x[:, 0:w - 2], x[:, 1:w - 1]),
                             x[:, 2:w])


def fc_sigmoid_kernel(x_ref, w_ref, b_ref, o_ref):
    z = jnp.dot(x_ref[...], w_ref[...], preferred_element_type=jnp.float32)
    z = z + b_ref[...]
    o_ref[...] = 1.0 / (1.0 + jnp.exp(-z))


# ------------------------------- wrappers ----------------------------------

def _conv_matmul(patches, w_p, b_p, tm, tk, nk, k_total, apply_relu, pool_width):
    m = patches.shape[0]
    k_pad, n_pad = w_p.shape
    mt = -(-m // tm)
    k_rem = k_total - (nk - 1) * tk
    ragged_rem = None if k_rem == tk else k_rem

    if pool_width is not None:
        out_rows = pool_width - 2      # output array holds exactly the pooled rows
        out_block_rows = out_rows
    else:
        out_rows = m
        out_block_rows = tm

    kernel = functools.partial(conv_mm_kernel, nk=nk, k_rem=ragged_rem,
                               apply_relu=apply_relu, pool_width=pool_width)
    return pl.pallas_call(
        kernel,
        out_shape=jax.ShapeDtypeStruct((out_rows, n_pad), jnp.bfloat16),
        grid=(mt, nk),
        in_specs=[
            pl.BlockSpec((tm, tk), lambda i, kk: (i, kk)),
            pl.BlockSpec((tk, n_pad), lambda i, kk: (kk, 0)),
            pl.BlockSpec((1, n_pad), lambda i, kk: (0, 0)),
        ],
        out_specs=pl.BlockSpec((out_block_rows, n_pad), lambda i, kk: (i, 0)),
        scratch_shapes=[pltpu.VMEM((tm, n_pad), jnp.float32)],
        compiler_params=pltpu.CompilerParams(
            dimension_semantics=("parallel", "arbitrary")),
        cost_estimate=pl.CostEstimate(
            flops=2 * m * k_total * n_pad,
            transcendentals=0,
            bytes_accessed=(m * k_total * 2            # patches read once
                            + mt * k_pad * n_pad * 2   # weights re-streamed / M tile
                            + out_rows * n_pad * 2     # bf16 output
                            + n_pad * 4)),
    )(patches, w_p, b_p)


def conv_layer(x, w_p, b_p, *, cout, cin, kh, kw, k, tk, nk,
               stride, relu=False, pool=False):
    """PyTorch-semantics Conv2d (VALID, square stride) (+ReLU) (+MaxPool(1,3)).

    x: (1, cin, H, W).  w_p/b_p are the pre-padded bf16 weight matrix
    (k_pad, n_pad) and f32 bias row (1, n_pad) built once by prep_params.
    Output dtype is bf16.
    """
    n, c, h, wdt = x.shape
    assert n == 1 and c == cin
    ho = (h - kh) // stride + 1
    wo = (wdt - kw) // stride + 1
    m = ho * wo

    # im2col via native conv codegen (no XLA gather); bf16 halves glue traffic.
    # Feature ordering is (c, kh, kw) == PyTorch w.reshape(cout, cin*kh*kw).
    patches = jax.lax.conv_general_dilated_patches(
        x.astype(jnp.bfloat16), (kh, kw), (stride, stride), "VALID",
        dimension_numbers=("NCHW", "OIHW", "NHWC"))    # (1, ho, wo, cin*kh*kw)
    patches = patches.reshape(m, k)
    # NOTE: no jnp.pad of the patch matrix -- ragged M / K edge tiles are
    # handled in-kernel / by Pallas masked edge blocks (saves an m x k copy).

    tm = _choose_tm(m)
    mt = -(-m // tm)

    fuse_pool = pool and ho == 1 and wo >= 3 and mt == 1
    out = _conv_matmul(patches, w_p, b_p, tm, tk, nk, k,
                       relu, wo if fuse_pool else None)

    if fuse_pool:
        res = out[:, :cout]                              # (wo-2, cout) bf16
        return jnp.transpose(res, (1, 0))[None, :, None, :]  # (1,cout,1,wo-2)

    out = out[:, :cout].reshape(ho, wo, cout)
    out = jnp.transpose(out, (2, 0, 1))[None]                # (1,cout,ho,wo)
    if pool:
        out = maxpool_1x3(out)
    return out


def maxpool_1x3(x):
    """MaxPool2d(kernel_size=(1,3), stride=1), x: (N,C,H,W). Fallback path,
    tiled over rows so it never needs the whole array in VMEM."""
    n, c, h, w = x.shape
    assert w >= 3, "MaxPool2d((1,3), stride=1) requires W >= 3"
    wo = w - 2
    rows = n * c * h
    xr = x.reshape(rows, w)
    tr = min(_round_up(rows, 16), 1024)
    out = pl.pallas_call(
        maxpool_1x3_kernel,
        out_shape=jax.ShapeDtypeStruct((rows, wo), x.dtype),
        grid=(pl.cdiv(rows, tr),),
        in_specs=[pl.BlockSpec((tr, w), lambda i: (i, 0))],
        out_specs=pl.BlockSpec((tr, wo), lambda i: (i, 0)),
        compiler_params=pltpu.CompilerParams(
            dimension_semantics=("parallel",)),
    )(xr)
    return out.reshape(n, c, h, wo)


def fc_sigmoid(x, w, b):
    """Linear(800->1) + Sigmoid; x: (1,800), w: (1,800) torch layout, b: (1,).

    Lane dim 800 pads to 896 internally -- wasted lanes only, trivially small.
    """
    k = x.shape[1]
    xp = jnp.zeros((8, k), jnp.float32).at[0].set(x[0].astype(jnp.float32))
    wp = jnp.zeros((k, 128), jnp.float32).at[:, 0].set(w[0])
    bp = jnp.zeros((1, 128), jnp.float32).at[0, 0].set(b[0])
    out = pl.pallas_call(
        fc_sigmoid_kernel,
        out_shape=jax.ShapeDtypeStruct((8, 128), jnp.float32),
    )(xp, wp, bp)
    return out[0:1, 0:1]


# --------------------------- parameter preparation --------------------------

def prep_conv(w, b):
    """Reshape/transpose/pad/bf16-cast a conv weight ONCE (cached thereafter)."""
    cout, cin, kh, kw = w.shape
    k = cin * kh * kw
    n_pad = _round_up(cout, 128)
    if k <= 512:
        # Small contraction (conv1): keep K un-padded everywhere; the
        # full-extent K block is legal and MXU-side padding is free.
        nk, tk = 1, k
    else:
        nk = max(1, -(-k // TK_MAX))           # number of K tiles
        tk = _round_up(-(-k // nk), 128)       # balanced, lane-aligned tile
    k_pad = nk * tk
    wmat = jnp.transpose(w.reshape(cout, k)).astype(jnp.bfloat16)
    w_p = jnp.pad(wmat, ((0, k_pad - k), (0, n_pad - cout)))   # one-time, zero rows
    b_p = jnp.pad(b.astype(jnp.float32)[None, :], ((0, 0), (0, n_pad - cout)))
    meta = dict(cout=cout, cin=cin, kh=kh, kw=kw, k=k, tk=tk, nk=nk)
    return w_p, b_p, meta


_LAYER_CFG = [
    # name,   stride, relu,  pool
    ("conv1", 3, False, False),
    ("conv2", 1, False, True),
    ("conv3", 3, True, True),
    ("conv4", 3, True, True),
    ("conv5", 3, True, True),
    ("conv6", 3, True, True),
    ("conv7", 3, True, True),
    ("conv8", 3, True, True),
]


def prep_params(params):
    prepped = {}
    for name, _, _, _ in _LAYER_CFG:
        prepped[name] = prep_conv(params[name + "_w"], params[name + "_b"])
    prepped["fc1"] = (params["fc1_w"], params["fc1_b"])
    return prepped


# ------------------------- exact forward (full chain) ----------------------

def cnn_eec_forward(prepped, x):
    """Exact op sequence of cnn_eec.forward (shape-valid only for huge inputs)."""
    for name, stride, relu, pool in _LAYER_CFG:
        w_p, b_p, meta = prepped[name]
        x = conv_layer(x, w_p, b_p, stride=stride, relu=relu, pool=pool, **meta)
    x = x.reshape(1, 800)
    fw, fb = prepped["fc1"]
    x = fc_sigmoid(x, fw, fb)
    return x.reshape(1, 1)


# ------------------------------ parameters ---------------------------------

def init_params(key):
    shapes = {
        "conv1": (25, 1, 1, 12),
        "conv2": (25, 25, 25, 18),
        "conv3": (50, 25, 25, 14),
        "conv4": (100, 50, 50, 14),
        "conv5": (100, 100, 100, 14),
        "conv6": (100, 100, 100, 14),
        "conv7": (100, 100, 100, 14),
        "conv8": (100, 100, 100, 12),
    }
    params = {}
    keys = jax.random.split(key, 2 * (len(shapes) + 1))
    for i, (name, (co, ci, kh, kw)) in enumerate(shapes.items()):
        bound = 1.0 / np.sqrt(ci * kh * kw)
        params[name + "_w"] = jax.random.uniform(
            keys[2 * i], (co, ci, kh, kw), jnp.float32, -bound, bound)
        params[name + "_b"] = jax.random.uniform(
            keys[2 * i + 1], (co,), jnp.float32, -bound, bound)
    bound = 1.0 / np.sqrt(800.0)
    params["fc1_w"] = jax.random.uniform(keys[-2], (1, 800), jnp.float32, -bound, bound)
    params["fc1_b"] = jax.random.uniform(keys[-1], (1,), jnp.float32, -bound, bound)
    return params


# ------------------------------- references --------------------------------

def conv_ref(x, w, b, stride):
    """XLA reference conv on bf16-rounded inputs (matches kernel's bf16 cast;
    the kernel additionally rounds its OUTPUT to bf16, hence loose tolerances)."""
    xb = x.astype(jnp.bfloat16).astype(jnp.float32)
    wb = w.astype(jnp.bfloat16).astype(jnp.float32)
    y = jax.lax.conv_general_dilated(
        xb, wb, (stride, stride), "VALID",
        dimension_numbers=("NCHW", "OIHW", "NCHW"),
        precision=jax.lax.Precision.HIGHEST)
    return y + b[None, :, None, None]


def pool_ref(x):
    w = x.shape[-1]
    return jnp.maximum(jnp.maximum(x[..., 0:w - 2], x[..., 1:w - 1]), x[..., 2:w])


# --------------------------------- demo -------------------------------------

if __name__ == "__main__":
    key = jax.random.PRNGKey(0)
    pkey, dkey = jax.random.split(key)
    params = init_params(pkey)
    prepped = prep_params(params)          # weights padded/bf16-cast ONCE
    ks = jax.random.split(dkey, 8)

    # jitted per-layer functions (glue reshape/transpose fuses around the kernel).
    layer_fns = {}
    for name, stride, relu, pool in _LAYER_CFG:
        w_p, b_p, meta = prepped[name]
        layer_fns[name] = jax.jit(functools.partial(
            conv_layer, stride=stride, relu=relu, pool=pool, **meta))
    pool_fn = jax.jit(maxpool_1x3)
    fc_fn = jax.jit(fc_sigmoid)

    def run(name, x):
        w_p, b_p, _ = prepped[name]
        return layer_fns[name](x, w_p, b_p)

    outs = []

    # conv1 -> conv2 -> pool1  (minimal shape-valid input); conv1 exercises the
    # multi-M-tile + un-padded-K path, conv2 the ragged-K masking + fused pool.
    xa = jax.random.normal(ks[0], (1, 1, 73, 69), jnp.float32)
    y1 = run("conv1", xa)                                              # (1,25,25,20) bf16
    ref1 = conv_ref(xa, params["conv1_w"], params["conv1_b"], 3)
    np.testing.assert_allclose(np.asarray(y1, dtype=np.float32), np.asarray(ref1),
                               atol=2e-2, rtol=2e-2)
    # standalone (fallback, row-tiled) maxpool kernel check
    p1 = pool_fn(y1)                                                   # (1,25,25,18)
    np.testing.assert_allclose(np.asarray(p1, dtype=np.float32),
                               np.asarray(pool_ref(y1), dtype=np.float32),
                               atol=1e-6, rtol=1e-6)
    outs.append(run("conv2", y1))                                      # (1,25,1,1)

    # conv3 -> relu -> pool2  (fused epilogue) with reference check
    xb = jax.random.normal(ks[1], (1, 25, 25, 20), jnp.float32)
    y3 = run("conv3", xb)                                              # (1,50,1,1)
    ref3 = pool_ref(jnp.maximum(
        conv_ref(xb, params["conv3_w"], params["conv3_b"], 3), 0.0))
    np.testing.assert_allclose(np.asarray(y3, dtype=np.float32), np.asarray(ref3),
                               atol=2e-2, rtol=2e-2)
    outs.append(y3)

    # conv4 -> relu -> pool3
    xc = jax.random.normal(ks[2], (1, 50, 50, 20), jnp.float32)
    outs.append(run("conv4", xc))                                      # (1,100,1,1)

    # conv5/6/7 -> relu -> pool4/5/6
    for i, name in enumerate(["conv5", "conv6", "conv7"]):
        xd = jax.random.normal(ks[3 + i], (1, 100, 100, 20), jnp.float32)
        outs.append(run(name, xd))                                     # (1,100,1,1)

    # conv8 -> relu -> pool7 -> view(1,800) -> fc1 -> sigmoid -> view(1,1)
    xg = jax.random.normal(ks[6], (1, 100, 100, 39), jnp.float32)
    t = run("conv8", xg)                                               # (1,100,1,8)
    t = t.reshape(1, 800)
    t = fc_fn(t, params["fc1_w"], params["fc1_b"]).reshape(1, 1)
    outs.append(t)

    for o in outs:
        jax.block_until_ready(o)

    # matches PyTorch: X.numpy(); X.astype(float)  -> float64 numpy (1,1)
    result = np.asarray(outs[-1]).astype(float)
    assert result.shape == (1, 1) and result.dtype == np.float64
    assert np.all((result > 0.0) & (result < 1.0))     # sigmoid range sanity
    print("KERNEL_OK")
</pallas_src>

<mosaic_0001>
module attributes {stable_mosaic.version = 11 : i64} {
  func.func @conv_mm_kernel(%arg0: i32, %arg1: i32, %arg2: memref<256x12xbf16, #tpu.memory_space<vmem>>, %arg3: memref<12x128xbf16, #tpu.memory_space<vmem>>, %arg4: memref<1x128xf32, #tpu.memory_space<vmem>>, %arg5: memref<256x128xbf16, #tpu.memory_space<vmem>>, %arg6: memref<256x128xf32, #tpu.memory_space<vmem>>) attributes {dimension_semantics = [#tpu.dimension_semantics<parallel>, #tpu.dimension_semantics<arbitrary>], iteration_bounds = array<i64: 2, 1>, scalar_prefetch = 0 : i64, scratch_operands = 1 : i64, tpu.core_type = #tpu.core_type<tc>, window_params = [{transform_indices = @transform_0, window_bounds = array<i64: 256, 12>}, {transform_indices = @transform_1, window_bounds = array<i64: 12, 128>}, {pipeline_mode = #tpu.pipeline_mode<synchronous>, transform_indices = @transform_2, window_bounds = array<i64: 1, 128>}, {transform_indices = @transform_3, window_bounds = array<i64: 256, 128>}]} {
    %c0_i32 = arith.constant 0 : i32
    %0 = arith.cmpi eq, %arg1, %c0_i32 : i32
    %1 = arith.extui %0 : i1 to i32
    %c0_i32_0 = arith.constant 0 : i32
    %2 = arith.cmpi ne, %1, %c0_i32_0 : i32
    scf.if %2 {
      %cst_10 = arith.constant 0.000000e+00 : f32
      %12 = vector.broadcast %cst_10 : f32 to vector<256x128xf32>
      %c0_11 = arith.constant 0 : index
      %c0_12 = arith.constant 0 : index
      %13 = vector.load %arg6[%c0_11, %c0_12] : memref<256x128xf32, #tpu.memory_space<vmem>>, vector<256x128xf32>
      tpu.vector_store %arg6[%c0_11, %c0_12], %12 {strides = array<i32>} : memref<256x128xf32, #tpu.memory_space<vmem>>, vector<256x128xf32>,
    } else {
    }
    %c0 = arith.constant 0 : index
    %c0_1 = arith.constant 0 : index
    %3 = vector.load %arg6[%c0, %c0_1] : memref<256x128xf32, #tpu.memory_space<vmem>>, vector<256x128xf32>
    %c0_2 = arith.constant 0 : index
    %c0_3 = arith.constant 0 : index
    %4 = vector.load %arg2[%c0_2, %c0_3] : memref<256x12xbf16, #tpu.memory_space<vmem>>, vector<256x12xbf16>
    %c0_4 = arith.constant 0 : index
    %c0_5 = arith.constant 0 : index
    %5 = vector.load %arg3[%c0_4, %c0_5] : memref<12x128xbf16, #tpu.memory_space<vmem>>, vector<12x128xbf16>
    %cst = arith.constant dense<0.000000e+00> : vector<256x128xf32>
    %6 = tpu.matmul %4, %5, %cst {dimension_numbers = #tpu.dot_dimension_numbers<[1], [0], [0], [1], [0, 0, 1, 1], [], []>} : vector<256x12xbf16>, vector<12x128xbf16>, vector<256x128xf32> -> vector<256x128xf32>
    %7 = arith.addf %3, %6 : vector<256x128xf32>
    %c0_6 = arith.constant 0 : index
    %c0_7 = arith.constant 0 : index
    %8 = vector.load %arg6[%c0_6, %c0_7] : memref<256x128xf32, #tpu.memory_space<vmem>>, vector<256x128xf32>
    tpu.vector_store %arg6[%c0_6, %c0_7], %7 {strides = array<i32>} : memref<256x128xf32, #tpu.memory_space<vmem>>, vector<256x128xf32>,
    %c0_i32_8 = arith.constant 0 : i32
    %9 = arith.cmpi eq, %arg1, %c0_i32_8 : i32
    %10 = arith.extui %9 : i1 to i32
    %c0_i32_9 = arith.constant 0 : i32
    %11 = arith.cmpi ne, %10, %c0_i32_9 : i32
    scf.if %11 {
      %c0_10 = arith.constant 0 : index
      %c0_11 = arith.constant 0 : index
      %12 = vector.load %arg6[%c0_10, %c0_11] : memref<256x128xf32, #tpu.memory_space<vmem>>, vector<256x128xf32>
      %c0_12 = arith.constant 0 : index
      %c0_13 = arith.constant 0 : index
      %13 = vector.load %arg4[%c0_12, %c0_13] : memref<1x128xf32, #tpu.memory_space<vmem>>, vector<1x128xf32>
      %14 = vector.broadcast %13 : vector<1x128xf32> to vector<256x128xf32>
      %15 = arith.addf %12, %14 : vector<256x128xf32>
      %16 = arith.truncf %15 : vector<256x128xf32> to vector<256x128xbf16>
      %c0_14 = arith.constant 0 : index
      %c0_15 = arith.constant 0 : index
      %17 = vector.load %arg5[%c0_14, %c0_15] : memref<256x128xbf16, #tpu.memory_space<vmem>>, vector<256x128xbf16>
      tpu.vector_store %arg5[%c0_14, %c0_15], %16 {strides = array<i32>} : memref<256x128xbf16, #tpu.memory_space<vmem>>, vector<256x128xbf16>,
    } else {
    }
    return
  }
  func.func @transform_0(%arg0: i32, %arg1: i32) -> (i32, i32) {
    %c0_i32 = arith.constant 0 : i32
    return %arg0, %arg1 : i32, i32
  }
  func.func @transform_1(%arg0: i32, %arg1: i32) -> (i32, i32) {
    %c0_i32 = arith.constant 0 : i32
    %c0_i32_0 = arith.constant 0 : i32
    return %arg1, %c0_i32 : i32, i32
  }
  func.func @transform_2(%arg0: i32, %arg1: i32) -> (i32, i32) {
    %c0_i32 = arith.constant 0 : i32
    %c0_i32_0 = arith.constant 0 : i32
    %c0_i32_1 = arith.constant 0 : i32
    return %c0_i32, %c0_i32_0 : i32, i32
  }
  func.func @transform_3(%arg0: i32, %arg1: i32) -> (i32, i32) {
    %c0_i32 = arith.constant 0 : i32
    %c0_i32_0 = arith.constant 0 : i32
    return %arg0, %c0_i32 : i32, i32
  }
}

</mosaic_0001>

<llo_original>
// kernel: conv_layer.1
$region0: #{conv_layer.1}
  #allocation0 [shape = 'u32[]', space=smem, size = 0x4, offset = 0x4, fixed_abs, tag = 'smem constant byte address 0x4 - core index']
  #allocation1 [shape = 'u32[144,128]{1,0:T(1,128)}', space=vmem, size = 0x12000, scoped, tag = 'internal scratch']
  #allocation2 [shape = 'f32[256,128]{1,0:T(8,128)}', space=vmem, size = 0x20000, scoped, tag = 'scratch operand']
  %s0 = inlined_call_operand.vmem [shape: bf16[500,12], index: 0, kind: input, shape index: {}]
  %s1 = inlined_call_operand.vmem [shape: bf16[12,128], index: 1, kind: input, shape index: {}]
  %s2 = inlined_call_operand.vmem [shape: f32[1,128], index: 2, kind: input, shape index: {}]
  %s3 = inlined_call_operand.vmem [shape: bf16[500,128], index: 3, kind: output, shape index: {}]
  %s4 = sld [smem:[#allocation0]]
  $region97: #{conv_layer.1} parent=0
    _
  %s6 = ssub.s32 1, %s4
  %s7 = scalar_select 0, %s6, %s4
  $region1: #{conv_layer.1} parent=0
    #allocation3 [shape = 'u8[131072]{0}', space=vmem, size = 0x20000, scoped, tag = 'output window, operand 0']
    loop: start=0, step=1, limit=4
    $region2: #{conv_layer.1} parent=1 // loop_pre_header
      _
    $region3: #{conv_layer.1} parent=1 // loop_header
      %s9 = sphi 0, %s13
      %p10 = scmp.ge.s32.totalorder %s9, 4
      %s16 = sphi 0, %s28
      %s17 = sphi 0, %s24
      %s18 = sphi 0, %s16
      %s19 = sphi 0, %s17
      %s20 = sphi 0, %s18
      %s21 = sphi 0, %s19
      %s33 = sphi 0, %s35
      %s36 = sphi 0, %s33
      %s37 = sphi 0, %s36
      %s53 = sphi 0, %s37
      %s59 = sphi 0, %s61
      %s62 = sphi 0, %s59
      %s63 = sphi 0, %s62
      %s79 = sphi 0, %s63
      %s83 = sphi 0, %s83
      %s85 = sphi 0, %s83
      %s86 = sphi 0, %s85
      %s100 = sphi 0, %s86
      %s106 = sphi 0, %s108
      %s109 = sphi 0, %s106
      %s110 = sphi 0, %s109
      %s126 = sphi 0, %s110
    $region4: #{conv_layer.1} parent=1 // loop_header_branch
      %12 = sbr.rel (%p10) target = $region8
    $region5: #{conv_layer.1} parent=1 // loop_body
      %s14 = ssub.s32 %s9, 1
      %s15 = ssub.s32 %s9, 2
      %s22 = sadd.s32 1, %s17
      %p23 = scmp.ge.s32.totalorder %s22, 1
      %s24 = scalar_select %p23, 0, %s22
      %s25 = sadd.s32 1, %s16
      %s26 = scalar_select %p23, %s25, %s16
      %p27 = scmp.ge.s32.totalorder %s26, 2
      %s28 = scalar_select %p27, 0, %s26
      %s29 = ssub.s32 %s16, %s28
      %s30 = ssub.s32 %s17, %s24
      %s31 = sor.u32 %s29, %s30
      %p32 = scmp.eq.s32.totalorder %s31, 0
      %s34 = sadd.s32 %s33, 1
      %s35 = scalar_select %p32, %s33, %s34
      %p38 = pneg %p32
      %p39 = scmp.eq.s32.totalorder %s9, 1
      %p40 = por %p38, %p39
      %p41 = scmp.ne.s32.totalorder %s33, %s36
      %p42 = scmp.eq.s32.totalorder %s9, 0
      %p43 = por %p41, %p42
      %p44 = scmp.ne.s32.totalorder %s33, %s36
      %p45 = scmp.eq.s32.totalorder %s14, 1
      %p46 = por %p44, %p45
      %p47 = scmp.ne.s32.totalorder %s36, %s37
      %p48 = scmp.eq.s32.totalorder %s14, 0
      %p49 = por %p47, %p48
      %p50 = scmp.ne.s32.totalorder %s36, %s37
      %p51 = scmp.eq.s32.totalorder %s15, 1
      %p52 = por %p50, %p51
      %p54 = scmp.ne.s32.totalorder %s37, %s53
      %p55 = scmp.eq.s32.totalorder %s15, 0
      %p56 = por %p54, %p55
      %s57 = ssub.s32 %s17, %s24
      %p58 = scmp.eq.s32.totalorder %s57, 0
      %s60 = sadd.s32 %s59, 1
      %s61 = scalar_select %p58, %s59, %s60
      %p64 = pneg %p58
      %p65 = scmp.eq.s32.totalorder %s9, 1
      %p66 = por %p64, %p65
      %p67 = scmp.ne.s32.totalorder %s59, %s62
      %p68 = scmp.eq.s32.totalorder %s9, 0
      %p69 = por %p67, %p68
      %p70 = scmp.ne.s32.totalorder %s59, %s62
      %p71 = scmp.eq.s32.totalorder %s14, 1
      %p72 = por %p70, %p71
      %p73 = scmp.ne.s32.totalorder %s62, %s63
      %p74 = scmp.eq.s32.totalorder %s14, 0
      %p75 = por %p73, %p74
      %p76 = scmp.ne.s32.totalorder %s62, %s63
      %p77 = scmp.eq.s32.totalorder %s15, 1
      %p78 = por %p76, %p77
      %p80 = scmp.ne.s32.totalorder %s63, %s79
      %p81 = scmp.eq.s32.totalorder %s15, 0
      %p82 = por %p80, %p81
      %s84 = sadd.s32 %s83, 1
      %p87 = scmp.eq.s32.totalorder %s9, 1
      %p88 = scmp.ne.s32.totalorder %s83, %s85
      %p89 = scmp.eq.s32.totalorder %s9, 0
      %p90 = por %p88, %p89
      %p91 = scmp.ne.s32.totalorder %s83, %s85
      %p92 = scmp.eq.s32.totalorder %s14, 1
      %p93 = por %p91, %p92
      %p94 = scmp.ne.s32.totalorder %s85, %s86
      %p95 = scmp.eq.s32.totalorder %s14, 0
      %p96 = por %p94, %p95
      %p97 = scmp.ne.s32.totalorder %s85, %s86
      %p98 = scmp.eq.s32.totalorder %s15, 1
      %p99 = por %p97, %p98
      %p101 = scmp.ne.s32.totalorder %s86, %s100
      %p102 = scmp.eq.s32.totalorder %s15, 0
      %p103 = por %p101, %p102
      %s104 = ssub.s32 %s16, %s28
      %p105 = scmp.eq.s32.totalorder %s104, 0
      %s107 = sadd.s32 %s106, 1
      %s108 = scalar_select %p105, %s106, %s107
      %p111 = pneg %p105
      %p112 = scmp.eq.s32.totalorder %s9, 1
      %p113 = por %p111, %p112
      %p114 = scmp.ne.s32.totalorder %s106, %s109
      %p115 = scmp.eq.s32.totalorder %s9, 0
      %p116 = por %p114, %p115
      %p117 = scmp.ne.s32.totalorder %s106, %s109
      %p118 = scmp.eq.s32.totalorder %s14, 1
      %p119 = por %p117, %p118
      %p120 = scmp.ne.s32.totalorder %s109, %s110
      %p121 = scmp.eq.s32.totalorder %s14, 0
      %p122 = por %p120, %p121
      %p123 = scmp.ne.s32.totalorder %s109, %s110
      %p124 = scmp.eq.s32.totalorder %s15, 1
      %p125 = por %p123, %p124
      %p127 = scmp.ne.s32.totalorder %s110, %s126
      %p128 = scmp.eq.s32.totalorder %s15, 0
      %p129 = por %p127, %p128
      %p130 = scmp.le.s32.totalorder 1, %s9
      %p131 = scmp.lt.s32.totalorder %s9, 3
      %p132 = pnand %p130, %p131
      %p133 = pneg %p132
      // Predicated region
      $region9: #{conv_layer.1} parent=5 // pred_check
        _
      $region10: #{conv_layer.1} parent=5 // pred_check_branch
        %135 = sbr.rel (%p132) target = $region12
      $region11: #{conv_layer.1} parent=5 // pred_region
        %s136 = ssub.s32 %s9, 1
        // Predicated region
        $region13: #{conv_layer.1} parent=11 // pred_check
          %p137 = pneg %p75
        $region14: #{conv_layer.1} parent=11 // pred_check_branch
          %139 = sbr.rel (%p137) target = $region16
        $region15: #{conv_layer.1} parent=11 // pred_region
          %s140 = smul.u32 2, %s19
          %p141 = scmp.lt.s32.totalorder %s140, 1
          %s142 = scalar_select %p141, %s140, 1
          %s143 = smul.addr %s142, 4
          %s144 = scalar_lea.vmem %s1, %s143
          %s145 = smul.u32 2, %s19
        $region16: #{conv_layer.1} parent=11 // pred_fallthru
          _
        // Predicated region
        $region17: #{conv_layer.1} parent=11 // pred_check
          %p146 = pneg %p96
        $region18: #{conv_layer.1} parent=11 // pred_check_branch
          %148 = sbr.rel (%p146) target = $region20
        $region19: #{conv_layer.1} parent=11 // pred_region
          _
        $region20: #{conv_layer.1} parent=11 // pred_fallthru
          _
      $region12: #{conv_layer.1} parent=5 // pred_fallthru
        _
      %p149 = scmp.lt.s32.totalorder %s9, 2
      // Predicated region
      $region21: #{conv_layer.1} parent=5 // pred_check
        %p150 = pneg %p149
      $region22: #{conv_layer.1} parent=5 // pred_check_branch
        %152 = sbr.rel (%p150) target = $region24
      $region23: #{conv_layer.1} parent=5 // pred_region
        // Predicated region
        $region25: #{conv_layer.1} parent=23 // pred_check
          %p153 = pneg %p43
        $region26: #{conv_layer.1} parent=23 // pred_check_branch
          %155 = sbr.rel (%p153) target = $region28
        $region27: #{conv_layer.1} parent=23 // pred_region
          %s156 = smul.u32 32, %s16
          %s157 = ssub.s32 63, %s156
          %p158 = scmp.lt.s32.totalorder %s157, 32
          %s159 = scalar_select %p158, %s157, 32
          %s160 = smul.u32 64, %s159
          %p161 = scmp.lt.s32.totalorder %s156, 62
          %s162 = scalar_select %p161, %s156, 62
          %p163 = scmp.lt.s32.totalorder %s17, 0
          %s164 = scalar_select %p163, %s17, 0
          %s165 = sadd.s32 %s164, %s162
          %s166 = smul.addr %s165, 4
          %s167 = scalar_lea.vmem %s0, %s166
          %s168 = smul.u32 32, %s16
          %s169 = ssub.s32 63, %s168
          %p170 = scmp.lt.s32.totalorder %s169, 32
          %s171 = scalar_select %p170, %s169, 32
          %s172 = smul.u32 64, %s171
        $region28: #{conv_layer.1} parent=23 // pred_fallthru
          _
      $region24: #{conv_layer.1} parent=5 // pred_fallthru
        _
      %p173 = scmp.le.s32.totalorder 1, %s9
      %p174 = scmp.lt.s32.totalorder %s9, 3
      %p175 = pnand %p173, %p174
      %p176 = pneg %p175
      // Predicated region
      $region29: #{conv_layer.1} parent=5 // pred_check
        _
      $region30: #{conv_layer.1} parent=5 // pred_check_branch
        %178 = sbr.rel (%p175) target = $region32
      $region31: #{conv_layer.1} parent=5 // pred_region
        %s179 = ssub.s32 %s9, 1
        %s180 = smul.u32 32, %s18
        %s181 = ssub.s32 63, %s180
        %p182 = scmp.lt.s32.totalorder %s181, 32
        %s183 = scalar_select %p182, %s181, 32
        %s184 = smul.u32 64, %s183
        %p185 = scmp.lt.s32.totalorder %s180, 62
        %s186 = scalar_select %p185, %s180, 62
        %p187 = scmp.lt.s32.totalorder %s19, 0
        %s188 = scalar_select %p187, %s19, 0
        %s189 = sadd.s32 %s188, %s186
        %s190 = smul.addr %s189, 4
        %s191 = scalar_lea.vmem %s0, %s190
        %p192 = pneg %p49
        %p193 = pneg %p46
        %s194 = smul.u32 2, %s19
        %p195 = scmp.lt.s32.totalorder %s194, 1
        %s196 = scalar_select %p195, %s194, 1
        %s197 = smul.addr %s196, 4
        %s198 = scalar_lea.vmem %s1, %s197
        %p199 = pneg %p75
        %p200 = pneg %p72
        %p201 = pneg %p96
        %p202 = pneg %p93
        %p203 = pneg %p122
        %p204 = pneg %p119
        %s205 = sand.u32 %s109, 1
        %s206 = sand.u32 %s109, 1
        %s207 = smul.addr %s206, 128
        %s208 = scalar_lea.vmem [#allocation3], %s207
        %s209 = smul.u32 32, %s18
        %s210 = ssub.s32 63, %s209
        %p211 = scmp.lt.s32.totalorder %s210, 32
        %s212 = scalar_select %p211, %s210, 32
        %s213 = smul.u32 64, %s212
        %p214 = scmp.lt.s32.totalorder %s209, 62
        %s215 = scalar_select %p214, %s209, 62
        %p216 = scmp.lt.s32.totalorder %s19, 0
        %s217 = scalar_select %p216, %s19, 0
        %s218 = sadd.s32 %s217, %s215
        %s219 = smul.addr %s218, 4
        %s220 = scalar_lea.vmem %s0, %s219
        %s221 = smul.u32 32, %s18
        %s222 = ssub.s32 63, %s221
        %p223 = scmp.lt.s32.totalorder %s222, 32
        %s224 = scalar_select %p223, %s222, 32
        %s225 = smul.u32 64, %s224
        %s226 = smul.u32 2, %s19
        %p227 = scmp.lt.s32.totalorder %s226, 1
        %s228 = scalar_select %p227, %s226, 1
        %s229 = smul.addr %s228, 4
        %s230 = scalar_lea.vmem %s1, %s229
        %s231 = smul.u32 2, %s19
        %s232 = smul.u32 32, %s18
        %s233 = ssub.s32 63, %s232
        %p234 = scmp.lt.s32.totalorder %s233, 32
        %s235 = scalar_select %p234, %s233, 32
        %s236 = smul.u32 64, %s235
        %p238 = scmp.eq.s32.totalorder %s19, 0
        // Predicated region
        $region33: #{conv_layer.1} parent=31 // pred_check
          %p239 = pneg %p238
        $region34: #{conv_layer.1} parent=31 // pred_check_branch
          %241 = sbr.rel (%p239) target = $region36
        $region35: #{conv_layer.1} parent=31 // pred_region
          %242 = vst [vmem:[#allocation2] sm:$0xff] 0.0
          %243 = vst [vmem:[#allocation2 + $0x8] sm:$0xff] 0.0
          %244 = vst [vmem:[#allocation2 + $0x10] sm:$0xff] 0.0
          %245 = vst [vmem:[#allocation2 + $0x18] sm:$0xff] 0.0
          %246 = vst [vmem:[#allocation2 + $0x20] sm:$0xff] 0.0
          %247 = vst [vmem:[#allocation2 + $0x28] sm:$0xff] 0.0
          %248 = vst [vmem:[#allocation2 + $0x30] sm:$0xff] 0.0
          %249 = vst [vmem:[#allocation2 + $0x38] sm:$0xff] 0.0
          %250 = vst [vmem:[#allocation2 + $0x40] sm:$0xff] 0.0
          %251 = vst [vmem:[#allocation2 + $0x48] sm:$0xff] 0.0
          %252 = vst [vmem:[#allocation2 + $0x50] sm:$0xff] 0.0
          %253 = vst [vmem:[#allocation2 + $0x58] sm:$0xff] 0.0
          %254 = vst [vmem:[#allocation2 + $0x60] sm:$0xff] 0.0
          %255 = vst [vmem:[#allocation2 + $0x68] sm:$0xff] 0.0
          %256 = vst [vmem:[#allocation2 + $0x70] sm:$0xff] 0.0
          %257 = vst [vmem:[#allocation2 + $0x78] sm:$0xff] 0.0
          %258 = vst [vmem:[#allocation2 + $0x80] sm:$0xff] 0.0
          %259 = vst [vmem:[#allocation2 + $0x88] sm:$0xff] 0.0
          %260 = vst [vmem:[#allocation2 + $0x90] sm:$0xff] 0.0
          %261 = vst [vmem:[#allocation2 + $0x98] sm:$0xff] 0.0
          %262 = vst [vmem:[#allocation2 + $0xa0] sm:$0xff] 0.0
          %263 = vst [vmem:[#allocation2 + $0xa8] sm:$0xff] 0.0
          %264 = vst [vmem:[#allocation2 + $0xb0] sm:$0xff] 0.0
          %265 = vst [vmem:[#allocation2 + $0xb8] sm:$0xff] 0.0
          %266 = vst [vmem:[#allocation2 + $0xc0] sm:$0xff] 0.0
          %267 = vst [vmem:[#allocation2 + $0xc8] sm:$0xff] 0.0
          %268 = vst [vmem:[#allocation2 + $0xd0] sm:$0xff] 0.0
          %269 = vst [vmem:[#allocation2 + $0xd8] sm:$0xff] 0.0
          %270 = vst [vmem:[#allocation2 + $0xe0] sm:$0xff] 0.0
          %271 = vst [vmem:[#allocation2 + $0xe8] sm:$0xff] 0.0
          %272 = vst [vmem:[#allocation2 + $0xf0] sm:$0xff] 0.0
          %273 = vst [vmem:[#allocation2 + $0xf8] sm:$0xff] 0.0
        $region36: #{conv_layer.1} parent=31 // pred_fallthru
          _
        %v274 = vld [vmem:[#allocation2] sm:$0xff]
        %v275 = vld [vmem:[#allocation2 + $0x8] sm:$0xff]
        %v276 = vld [vmem:[#allocation2 + $0x10] sm:$0xff]
        %v277 = vld [vmem:[#allocation2 + $0x18] sm:$0xff]
        %v278 = vld [vmem:[#allocation2 + $0x20] sm:$0xff]
        %v279 = vld [vmem:[#allocation2 + $0x28] sm:$0xff]
        %v280 = vld [vmem:[#allocation2 + $0x30] sm:$0xff]
        %v281 = vld [vmem:[#allocation2 + $0x38] sm:$0xff]
        %v282 = vld [vmem:[#allocation2 + $0x40] sm:$0xff]
        %v283 = vld [vmem:[#allocation2 + $0x48] sm:$0xff]
        %v284 = vld [vmem:[#allocation2 + $0x50] sm:$0xff]
        %v285 = vld [vmem:[#allocation2 + $0x58] sm:$0xff]
        %v286 = vld [vmem:[#allocation2 + $0x60] sm:$0xff]
        %v287 = vld [vmem:[#allocation2 + $0x68] sm:$0xff]
        %v288 = vld [vmem:[#allocation2 + $0x70] sm:$0xff]
        %v289 = vld [vmem:[#allocation2 + $0x78] sm:$0xff]
        %v290 = vld [vmem:[#allocation2 + $0x80] sm:$0xff]
        %v291 = vld [vmem:[#allocation2 + $0x88] sm:$0xff]
        %v292 = vld [vmem:[#allocation2 + $0x90] sm:$0xff]
        %v293 = vld [vmem:[#allocation2 + $0x98] sm:$0xff]
        %v294 = vld [vmem:[#allocation2 + $0xa0] sm:$0xff]
        %v295 = vld [vmem:[#allocation2 + $0xa8] sm:$0xff]
        %v296 = vld [vmem:[#allocation2 + $0xb0] sm:$0xff]
        %v297 = vld [vmem:[#allocation2 + $0xb8] sm:$0xff]
        %v298 = vld [vmem:[#allocation2 + $0xc0] sm:$0xff]
        %v299 = vld [vmem:[#allocation2 + $0xc8] sm:$0xff]
        %v300 = vld [vmem:[#allocation2 + $0xd0] sm:$0xff]
        %v301 = vld [vmem:[#allocation2 + $0xd8] sm:$0xff]
        %v302 = vld [vmem:[#allocation2 + $0xe0] sm:$0xff]
        %v303 = vld [vmem:[#allocation2 + $0xe8] sm:$0xff]
        %v304 = vld [vmem:[#allocation2 + $0xf0] sm:$0xff]
        %v305 = vld [vmem:[#allocation2 + $0xf8] sm:$0xff]
        %v306 = vld [vmem:[%s220] sm:$0xf]
        %v307 = vld [vmem:[%s220 + $0x4] sm:$0xf]
        %v308 = vld [vmem:[%s220 + $0x8] sm:$0xf]
        %v309 = vld [vmem:[%s220 + $0xc] sm:$0xf]
        %v310 = vld [vmem:[%s220 + $0x10] sm:$0xf]
        %v311 = vld [vmem:[%s220 + $0x14] sm:$0xf]
        %v312 = vld [vmem:[%s220 + $0x18] sm:$0xf]
        %v313 = vld [vmem:[%s220 + $0x1c] sm:$0xf]
        %v314 = vld [vmem:[%s220 + $0x20] sm:$0xf]
        %v315 = vld [vmem:[%s220 + $0x24] sm:$0xf]
        %v316 = vld [vmem:[%s220 + $0x28] sm:$0xf]
        %v317 = vld [vmem:[%s220 + $0x2c] sm:$0xf]
        %v318 = vld [vmem:[%s220 + $0x30] sm:$0xf]
        %v319 = vld [vmem:[%s220 + $0x34] sm:$0xf]
        %v320 = vld [vmem:[%s220 + $0x38] sm:$0xf]
        %v321 = vld [vmem:[%s220 + $0x3c] sm:$0xf]
        %v322 = vld [vmem:[%s220 + $0x40] sm:$0xf]
        %v323 = vld [vmem:[%s220 + $0x44] sm:$0xf]
        %v324 = vld [vmem:[%s220 + $0x48] sm:$0xf]
        %v325 = vld [vmem:[%s220 + $0x4c] sm:$0xf]
        %v326 = vld [vmem:[%s220 + $0x50] sm:$0xf]
        %v327 = vld [vmem:[%s220 + $0x54] sm:$0xf]
        %v328 = vld [vmem:[%s220 + $0x58] sm:$0xf]
        %v329 = vld [vmem:[%s220 + $0x5c] sm:$0xf]
        %v330 = vld [vmem:[%s220 + $0x60] sm:$0xf]
        %v331 = vld [vmem:[%s220 + $0x64] sm:$0xf]
        %v332 = vld [vmem:[%s220 + $0x68] sm:$0xf]
        %v333 = vld [vmem:[%s220 + $0x6c] sm:$0xf]
        %v334 = vld [vmem:[%s220 + $0x70] sm:$0xf]
        %v335 = vld [vmem:[%s220 + $0x74] sm:$0xf]
        %v336 = vld [vmem:[%s220 + $0x78] sm:$0xf]
        %v337 = vld [vmem:[%s220 + $0x7c] sm:$0xf]
        %v338 = vld [vmem:[%s230] sm:$0xf]
        %v339 = vld [vmem:[%s230 + $0x4] sm:$0x3]
        %v372 = vunpack.c.l.b16 %v306
        %v373 = vunpack.c.l.b16 %v307
        %v374 = vunpack.c.l.b16 %v308
        %v375 = vunpack.c.l.b16 %v309
        %v376 = vunpack.c.l.b16 %v310
        %v377 = vunpack.c.l.b16 %v311
        %v378 = vunpack.c.l.b16 %v312
        %v379 = vunpack.c.l.b16 %v313
        %v380 = vunpack.c.l.b16 %v314
        %v381 = vunpack.c.l.b16 %v315
        %v382 = vunpack.c.l.b16 %v316
        %v383 = vunpack.c.l.b16 %v317
        %v384 = vunpack.c.l.b16 %v318
        %v385 = vunpack.c.l.b16 %v319
        %v386 = vunpack.c.l.b16 %v320
        %v387 = vunpack.c.l.b16 %v321
        %v388 = vunpack.c.l.b16 %v322
        %v389 = vunpack.c.l.b16 %v323
        %v390 = vunpack.c.l.b16 %v324
        %v391 = vunpack.c.l.b16 %v325
        %v392 = vunpack.c.l.b16 %v326
        %v393 = vunpack.c.l.b16 %v327
        %v394 = vunpack.c.l.b16 %v328
        %v395 = vunpack.c.l.b16 %v329
        %v396 = vunpack.c.l.b16 %v330
        %v397 = vunpack.c.l.b16 %v331
        %v398 = vunpack.c.l.b16 %v332
        %v399 = vunpack.c.l.b16 %v333
        %v400 = vunpack.c.l.b16 %v334
        %v401 = vunpack.c.l.b16 %v335
        %v402 = vunpack.c.l.b16 %v336
        %v403 = vunpack.c.l.b16 %v337
        %v404 = vpack.c.b16 %v373, %v372
        %v405 = vpack.c.b16 %v375, %v374
        %v406 = vpack.c.b16 %v377, %v376
        %v407 = vpack.c.b16 %v379, %v378
        %v408 = vpack.c.b16 %v381, %v380
        %v409 = vpack.c.b16 %v383, %v382
        %v410 = vpack.c.b16 %v385, %v384
        %v411 = vpack.c.b16 %v387, %v386
        %v412 = vpack.c.b16 %v389, %v388
        %v413 = vpack.c.b16 %v391, %v390
        %v414 = vpack.c.b16 %v393, %v392
        %v415 = vpack.c.b16 %v395, %v394
        %v416 = vpack.c.b16 %v397, %v396
        %v417 = vpack.c.b16 %v399, %v398
        %v418 = vpack.c.b16 %v401, %v400
        %v419 = vpack.c.b16 %v403, %v402
        %v422 = vunpack.c.l.b16 %v338
        %v423 = vunpack.c.l.b16 %v339
        %v424 = vpack.c.b16 %v423, %v422
        %vm425 = vcmask 97280
        %v427 = vsel %vm425, %v404, 0
        %v430 = vsel %vm425, %v405, 0
        %v433 = vsel %vm425, %v406, 0
        %v436 = vsel %vm425, %v407, 0
        %v439 = vsel %vm425, %v408, 0
        %v442 = vsel %vm425, %v409, 0
        %v445 = vsel %vm425, %v410, 0
        %v448 = vsel %vm425, %v411, 0
        %v451 = vsel %vm425, %v412, 0
        %v454 = vsel %vm425, %v413, 0
        %v457 = vsel %vm425, %v414, 0
        %v460 = vsel %vm425, %v415, 0
        %v463 = vsel %vm425, %v416, 0
        %v466 = vsel %vm425, %v417, 0
        %v469 = vsel %vm425, %v418, 0
        %v472 = vsel %vm425, %v419, 0
        %vm474 = vcmask 1045504
        %v476 = vsel %vm474, %v424, 0
        %478 = vmatprep.subr.bf16.mxu0 0
        %479 = vmatpush1.bf16.msra.mxu0 %v476
        %480 = vmatprep.subr.bf16.mxu0 0
        %481 = vmatpush1.bf16.msra.mxu0 0
        %482 = vmatprep.subr.bf16.mxu0 0
        %483 = vmatpush1.bf16.msra.mxu0 0
        %484 = vmatprep.subr.bf16.mxu0 0
        %485 = vmatpush1.bf16.msra.mxu0 0
        %486 = vmatprep.subr.bf16.mxu0 0
        %487 = vmatpush1.bf16.msra.mxu0 0
        %488 = vmatprep.subr.bf16.mxu0 0
        %489 = vmatpush1.bf16.msra.mxu0 0
        %490 = vmatprep.subr.bf16.mxu0 0
        %491 = vmatpush1.bf16.msra.mxu0 0
        %492 = vmatprep.subr.bf16.mxu0 0
        %493 = vmatpush1.bf16.msra.mxu0 0
        %494 = vmatprep.subr.bf16.mxu0 0
        %495 = vmatpush1.bf16.msra.mxu0 0
        %496 = vmatprep.subr.bf16.mxu0 0
        %497 = vmatpush1.bf16.msra.mxu0 0
        %498 = vmatprep.subr.bf16.mxu0 0
        %499 = vmatpush1.bf16.msra.mxu0 0
        %500 = vmatprep.subr.bf16.mxu0 0
        %501 = vmatpush1.bf16.msra.mxu0 0
        %502 = vmatprep.subr.bf16.mxu0 0
        %503 = vmatpush1.bf16.msra.mxu0 0
        %504 = vmatprep.subr.bf16.mxu0 0
        %505 = vmatpush1.bf16.msra.mxu0 0
        %506 = vmatprep.subr.bf16.mxu0 0
        %507 = vmatpush1.bf16.msra.mxu0 0
        %508 = vmatprep.subr.bf16.mxu0 0
        %509 = vmatpush1.bf16.msra.mxu0 0
        %510 = vmatprep.mubr.bf16.mxu0 0
        %511 = vmatmul.mubr.bf16.gmra.mrb[0].mxu0 %v427
        %v512 = vpop.f32.mrb[0].mxu0
        %v513 = vadd.f32 0.0, %v512
        %v514 = vpop.f32.mrb[0].mxu0
        %v515 = vpop.f32.mrb[0].mxu0
        %v516 = vadd.f32 0.0, %v515
        %v517 = vpop.f32.mrb[0].mxu0
        %518 = vmatprep.mubr.bf16.mxu0 0
        %519 = vmatmul.mubr.bf16.gmra.mrb[0].mxu0 %v430
        %v520 = vpop.f32.mrb[0].mxu0
        %v521 = vadd.f32 0.0, %v520
        %v522 = vpop.f32.mrb[0].mxu0
        %v523 = vpop.f32.mrb[0].mxu0
        %v524 = vadd.f32 0.0, %v523
        %v525 = vpop.f32.mrb[0].mxu0
        %526 = vmatprep.mubr.bf16.mxu0 0
        %527 = vmatmul.mubr.bf16.gmra.mrb[0].mxu0 %v433
        %v528 = vpop.f32.mrb[0].mxu0
        %v529 = vadd.f32 0.0, %v528
        %v530 = vpop.f32.mrb[0].mxu0
        %v531 = vpop.f32.mrb[0].mxu0
        %v532 = vadd.f32 0.0, %v531
        %v533 = vpop.f32.mrb[0].mxu0
        %534 = vmatprep.mubr.bf16.mxu0 0
        %535 = vmatmul.mubr.bf16.gmra.mrb[0].mxu0 %v436
        %v536 = vpop.f32.mrb[0].mxu0
        %v537 = vadd.f32 0.0, %v536
        %v538 = vpop.f32.mrb[0].mxu0
        %v539 = vpop.f32.mrb[0].mxu0
        %v540 = vadd.f32 0.0, %v539
        %v541 = vpop.f32.mrb[0].mxu0
        %542 = vmatprep.mubr.bf16.mxu0 0
        %543 = vmatmul.mubr.bf16.gmra.mrb[0].mxu0 %v439
        %v544 = vpop.f32.mrb[0].mxu0
        %v545 = vadd.f32 0.0, %v544
        %v546 = vpop.f32.mrb[0].mxu0
        %v547 = vpop.f32.mrb[0].mxu0
        %v548 = vadd.f32 0.0, %v547
        %v549 = vpop.f32.mrb[0].mxu0
        %550 = vmatprep.mubr.bf16.mxu0 0
        %551 = vmatmul.mubr.bf16.gmra.mrb[0].mxu0 %v442
        %v552 = vpop.f32.mrb[0].mxu0
        %v553 = vadd.f32 0.0, %v552
        %v554 = vpop.f32.mrb[0].mxu0
        %v555 = vpop.f32.mrb[0].mxu0
        %v556 = vadd.f32 0.0, %v555
        %v557 = vpop.f32.mrb[0].mxu0
        %558 = vmatprep.mubr.bf16.mxu0 0
        %559 = vmatmul.mubr.bf16.gmra.mrb[0].mxu0 %v445
        %v560 = vpop.f32.mrb[0].mxu0
        %v561 = vadd.f32 0.0, %v560
        %v562 = vpop.f32.mrb[0].mxu0
        %v563 = vpop.f32.mrb[0].mxu0
        %v564 = vadd.f32 0.0, %v563
        %v565 = vpop.f32.mrb[0].mxu0
        %566 = vmatprep.mubr.bf16.mxu0 0
        %567 = vmatmul.mubr.bf16.gmra.mrb[0].mxu0 %v448
        %v568 = vpop.f32.mrb[0].mxu0
        %v569 = vadd.f32 0.0, %v568
        %v570 = vpop.f32.mrb[0].mxu0
        %v571 = vpop.f32.mrb[0].mxu0
        %v572 = vadd.f32 0.0, %v571
        %v573 = vpop.f32.mrb[0].mxu0
        %574 = vmatprep.mubr.bf16.mxu0 0
        %575 = vmatmul.mubr.bf16.gmra.mrb[0].mxu0 %v451
        %v576 = vpop.f32.mrb[0].mxu0
        %v577 = vadd.f32 0.0, %v576
        %v578 = vpop.f32.mrb[0].mxu0
        %v579 = vpop.f32.mrb[0].mxu0
        %v580 = vadd.f32 0.0, %v579
        %v581 = vpop.f32.mrb[0].mxu0
        %582 = vmatprep.mubr.bf16.mxu0 0
        %583 = vmatmul.mubr.bf16.gmra.mrb[0].mxu0 %v454
        %v584 = vpop.f32.mrb[0].mxu0
        %v585 = vadd.f32 0.0, %v584
        %v586 = vpop.f32.mrb[0].mxu0
        %v587 = vpop.f32.mrb[0].mxu0
        %v588 = vadd.f32 0.0, %v587
        %v589 = vpop.f32.mrb[0].mxu0
        %590 = vmatprep.mubr.bf16.mxu0 0
        %591 = vmatmul.mubr.bf16.gmra.mrb[0].mxu0 %v457
        %v592 = vpop.f32.mrb[0].mxu0
        %v593 = vadd.f32 0.0, %v592
        %v594 = vpop.f32.mrb[0].mxu0
        %v595 = vpop.f32.mrb[0].mxu0
        %v596 = vadd.f32 0.0, %v595
        %v597 = vpop.f32.mrb[0].mxu0
        %598 = vmatprep.mubr.bf16.mxu0 0
        %599 = vmatmul.mubr.bf16.gmra.mrb[0].mxu0 %v460
        %v600 = vpop.f32.mrb[0].mxu0
        %v601 = vadd.f32 0.0, %v600
        %v602 = vpop.f32.mrb[0].mxu0
        %v603 = vpop.f32.mrb[0].mxu0
        %v604 = vadd.f32 0.0, %v603
        %v605 = vpop.f32.mrb[0].mxu0
        %606 = vmatprep.mubr.bf16.mxu0 0
        %607 = vmatmul.mubr.bf16.gmra.mrb[0].mxu0 %v463
        %v608 = vpop.f32.mrb[0].mxu0
        %v609 = vadd.f32 0.0, %v608
        %v610 = vpop.f32.mrb[0].mxu0
        %v611 = vpop.f32.mrb[0].mxu0
        %v612 = vadd.f32 0.0, %v611
        %v613 = vpop.f32.mrb[0].mxu0
        %614 = vmatprep.mubr.bf16.mxu0 0
        %615 = vmatmul.mubr.bf16.gmra.mrb[0].mxu0 %v466
        %v616 = vpop.f32.mrb[0].mxu0
        %v617 = vadd.f32 0.0, %v616
        %v618 = vpop.f32.mrb[0].mxu0
        %v619 = vpop.f32.mrb[0].mxu0
        %v620 = vadd.f32 0.0, %v619
        %v621 = vpop.f32.mrb[0].mxu0
        %622 = vmatprep.mubr.bf16.mxu0 0
        %623 = vmatmul.mubr.bf16.gmra.mrb[0].mxu0 %v469
        %v624 = vpop.f32.mrb[0].mxu0
        %v625 = vadd.f32 0.0, %v624
        %v626 = vpop.f32.mrb[0].mxu0
        %v627 = vpop.f32.mrb[0].mxu0
        %v628 = vadd.f32 0.0, %v627
        %v629 = vpop.f32.mrb[0].mxu0
        %630 = vmatprep.mubr.bf16.mxu0 0
        %631 = vmatmul.mubr.bf16.gmra.mrb[0].mxu0 %v472
        %v632 = vpop.f32.mrb[0].mxu0
        %v633 = vadd.f32 0.0, %v632
        %v634 = vpop.f32.mrb[0].mxu0
        %v635 = vpop.f32.mrb[0].mxu0
        %v636 = vadd.f32 0.0, %v635
        %v637 = vpop.f32.mrb[0].mxu0
        %638 = vdwg.mxu0
        %v639 = vadd.f32 %v274, %v513
        %v640 = vadd.f32 %v275, %v516
        %v641 = vadd.f32 %v276, %v521
        %v642 = vadd.f32 %v277, %v524
        %v643 = vadd.f32 %v278, %v529
        %v644 = vadd.f32 %v279, %v532
        %v645 = vadd.f32 %v280, %v537
        %v646 = vadd.f32 %v281, %v540
        %v647 = vadd.f32 %v282, %v545
        %v648 = vadd.f32 %v283, %v548
        %v649 = vadd.f32 %v284, %v553
        %v650 = vadd.f32 %v285, %v556
        %v651 = vadd.f32 %v286, %v561
        %v652 = vadd.f32 %v287, %v564
        %v653 = vadd.f32 %v288, %v569
        %v654 = vadd.f32 %v289, %v572
        %v655 = vadd.f32 %v290, %v577
        %v656 = vadd.f32 %v291, %v580
        %v657 = vadd.f32 %v292, %v585
        %v658 = vadd.f32 %v293, %v588
        %v659 = vadd.f32 %v294, %v593
        %v660 = vadd.f32 %v295, %v596
        %v661 = vadd.f32 %v296, %v601
        %v662 = vadd.f32 %v297, %v604
        %v663 = vadd.f32 %v298, %v609
        %v664 = vadd.f32 %v299, %v612
        %v665 = vadd.f32 %v300, %v617
        %v666 = vadd.f32 %v301, %v620
        %v667 = vadd.f32 %v302, %v625
        %v668 = vadd.f32 %v303, %v628
        %v669 = vadd.f32 %v304, %v633
        %v670 = vadd.f32 %v305, %v636
        %671 = vst [vmem:[#allocation2] sm:$0xff] %v639
        %672 = vst [vmem:[#allocation2 + $0x8] sm:$0xff] %v640
        %673 = vst [vmem:[#allocation2 + $0x10] sm:$0xff] %v641
        %674 = vst [vmem:[#allocation2 + $0x18] sm:$0xff] %v642
        %675 = vst [vmem:[#allocation2 + $0x20] sm:$0xff] %v643
        %676 = vst [vmem:[#allocation2 + $0x28] sm:$0xff] %v644
        %677 = vst [vmem:[#allocation2 + $0x30] sm:$0xff] %v645
        %678 = vst [vmem:[#allocation2 + $0x38] sm:$0xff] %v646
        %679 = vst [vmem:[#allocation2 + $0x40] sm:$0xff] %v647
        %680 = vst [vmem:[#allocation2 + $0x48] sm:$0xff] %v648
        %681 = vst [vmem:[#allocation2 + $0x50] sm:$0xff] %v649
        %682 = vst [vmem:[#allocation2 + $0x58] sm:$0xff] %v650
        %683 = vst [vmem:[#allocation2 + $0x60] sm:$0xff] %v651
        %684 = vst [vmem:[#allocation2 + $0x68] sm:$0xff] %v652
        %685 = vst [vmem:[#allocation2 + $0x70] sm:$0xff] %v653
        %686 = vst [vmem:[#allocation2 + $0x78] sm:$0xff] %v654
        %687 = vst [vmem:[#allocation2 + $0x80] sm:$0xff] %v655
        %688 = vst [vmem:[#allocation2 + $0x88] sm:$0xff] %v656
        %689 = vst [vmem:[#allocation2 + $0x90] sm:$0xff] %v657
        %690 = vst [vmem:[#allocation2 + $0x98] sm:$0xff] %v658
        %691 = vst [vmem:[#allocation2 + $0xa0] sm:$0xff] %v659
        %692 = vst [vmem:[#allocation2 + $0xa8] sm:$0xff] %v660
        %693 = vst [vmem:[#allocation2 + $0xb0] sm:$0xff] %v661
        %694 = vst [vmem:[#allocation2 + $0xb8] sm:$0xff] %v662
        %695 = vst [vmem:[#allocation2 + $0xc0] sm:$0xff] %v663
        %696 = vst [vmem:[#allocation2 + $0xc8] sm:$0xff] %v664
        %697 = vst [vmem:[#allocation2 + $0xd0] sm:$0xff] %v665
        %698 = vst [vmem:[#allocation2 + $0xd8] sm:$0xff] %v666
        %699 = vst [vmem:[#allocation2 + $0xe0] sm:$0xff] %v667
        %700 = vst [vmem:[#allocation2 + $0xe8] sm:$0xff] %v668
        %701 = vst [vmem:[#allocation2 + $0xf0] sm:$0xff] %v669
        %702 = vst [vmem:[#allocation2 + $0xf8] sm:$0xff] %v670
        // Predicated region
        $region37: #{conv_layer.1} parent=31 // pred_check
          %p703 = pneg %p238
        $region38: #{conv_layer.1} parent=31 // pred_check_branch
          %705 = sbr.rel (%p703) target = $region40
        $region39: #{conv_layer.1} parent=31 // pred_region
          %v706 = vld [vmem:[#allocation2] sm:$0xff]
          %v707 = vld [vmem:[#allocation2 + $0x8] sm:$0xff]
          %v708 = vld [vmem:[#allocation2 + $0x10] sm:$0xff]
          %v709 = vld [vmem:[#allocation2 + $0x18] sm:$0xff]
          %v710 = vld [vmem:[#allocation2 + $0x20] sm:$0xff]
          %v711 = vld [vmem:[#allocation2 + $0x28] sm:$0xff]
          %v712 = vld [vmem:[#allocation2 + $0x30] sm:$0xff]
          %v713 = vld [vmem:[#allocation2 + $0x38] sm:$0xff]
          %v714 = vld [vmem:[#allocation2 + $0x40] sm:$0xff]
          %v715 = vld [vmem:[#allocation2 + $0x48] sm:$0xff]
          %v716 = vld [vmem:[#allocation2 + $0x50] sm:$0xff]
          %v717 = vld [vmem:[#allocation2 + $0x58] sm:$0xff]
          %v718 = vld [vmem:[#allocation2 + $0x60] sm:$0xff]
          %v719 = vld [vmem:[#allocation2 + $0x68] sm:$0xff]
          %v720 = vld [vmem:[#allocation2 + $0x70] sm:$0xff]
          %v721 = vld [vmem:[#allocation2 + $0x78] sm:$0xff]
          %v722 = vld [vmem:[#allocation2 + $0x80] sm:$0xff]
          %v723 = vld [vmem:[#allocation2 + $0x88] sm:$0xff]
          %v724 = vld [vmem:[#allocation2 + $0x90] sm:$0xff]
          %v725 = vld [vmem:[#allocation2 + $0x98] sm:$0xff]
          %v726 = vld [vmem:[#allocation2 + $0xa0] sm:$0xff]
          %v727 = vld [vmem:[#allocation2 + $0xa8] sm:$0xff]
          %v728 = vld [vmem:[#allocation2 + $0xb0] sm:$0xff]
          %v729 = vld [vmem:[#allocation2 + $0xb8] sm:$0xff]
          %v730 = vld [vmem:[#allocation2 + $0xc0] sm:$0xff]
          %v731 = vld [vmem:[#allocation2 + $0xc8] sm:$0xff]
          %v732 = vld [vmem:[#allocation2 + $0xd0] sm:$0xff]
          %v733 = vld [vmem:[#allocation2 + $0xd8] sm:$0xff]
          %v734 = vld [vmem:[#allocation2 + $0xe0] sm:$0xff]
          %v735 = vld [vmem:[#allocation2 + $0xe8] sm:$0xff]
          %v736 = vld [vmem:[#allocation2 + $0xf0] sm:$0xff]
          %v737 = vld [vmem:[#allocation2 + $0xf8] sm:$0xff]
          %v738 = vld [vmem:[%s2] sm:$0x1]
          %v740 = vlaneseq
          %v741 = vshrl.u32 %v740, 7
          %v742 = vsub.s32 0, %v741
          %v743 = vrot.slane %v738, %v742
          %v745 = vadd.f32 %v706, %v743
          %v746 = vadd.f32 %v707, %v743
          %v747 = vadd.f32 %v708, %v743
          %v748 = vadd.f32 %v709, %v743
          %v749 = vadd.f32 %v710, %v743
          %v750 = vadd.f32 %v711, %v743
          %v751 = vadd.f32 %v712, %v743
          %v752 = vadd.f32 %v713, %v743
          %v753 = vadd.f32 %v714, %v743
          %v754 = vadd.f32 %v715, %v743
          %v755 = vadd.f32 %v716, %v743
          %v756 = vadd.f32 %v717, %v743
          %v757 = vadd.f32 %v718, %v743
          %v758 = vadd.f32 %v719, %v743
          %v759 = vadd.f32 %v720, %v743
          %v760 = vadd.f32 %v721, %v743
          %v761 = vadd.f32 %v722, %v743
          %v762 = vadd.f32 %v723, %v743
          %v763 = vadd.f32 %v724, %v743
          %v764 = vadd.f32 %v725, %v743
          %v765 = vadd.f32 %v726, %v743
          %v766 = vadd.f32 %v727, %v743
          %v767 = vadd.f32 %v728, %v743
          %v768 = vadd.f32 %v729, %v743
          %v769 = vadd.f32 %v730, %v743
          %v770 = vadd.f32 %v731, %v743
          %v771 = vadd.f32 %v732, %v743
          %v772 = vadd.f32 %v733, %v743
          %v773 = vadd.f32 %v734, %v743
          %v774 = vadd.f32 %v735, %v743
          %v775 = vadd.f32 %v736, %v743
          %v776 = vadd.f32 %v737, %v743
          %v777 = vpack.c.bf16 %v746, %v745
          %v778 = vpack.c.bf16 %v748, %v747
          %v779 = vpack.c.bf16 %v750, %v749
          %v780 = vpack.c.bf16 %v752, %v751
          %v781 = vpack.c.bf16 %v754, %v753
          %v782 = vpack.c.bf16 %v756, %v755
          %v783 = vpack.c.bf16 %v758, %v757
          %v784 = vpack.c.bf16 %v760, %v759
          %v785 = vpack.c.bf16 %v762, %v761
          %v786 = vpack.c.bf16 %v764, %v763
          %v787 = vpack.c.bf16 %v766, %v765
          %v788 = vpack.c.bf16 %v768, %v767
          %v789 = vpack.c.bf16 %v770, %v769
          %v790 = vpack.c.bf16 %v772, %v771
          %v791 = vpack.c.bf16 %v774, %v773
          %v792 = vpack.c.bf16 %v776, %v775
          %v809 = vunpack.c.l.b16 %v777
          %v810 = vunpack.c.h.b16 %v777
          %v811 = vunpack.c.l.b16 %v778
          %v812 = vunpack.c.h.b16 %v778
          %v813 = vunpack.c.l.b16 %v779
          %v814 = vunpack.c.h.b16 %v779
          %v815 = vunpack.c.l.b16 %v780
          %v816 = vunpack.c.h.b16 %v780
          %v817 = vunpack.c.l.b16 %v781
          %v818 = vunpack.c.h.b16 %v781
          %v819 = vunpack.c.l.b16 %v782
          %v820 = vunpack.c.h.b16 %v782
          %v821 = vunpack.c.l.b16 %v783
          %v822 = vunpack.c.h.b16 %v783
          %v823 = vunpack.c.l.b16 %v784
          %v824 = vunpack.c.h.b16 %v784
          %v825 = vunpack.c.l.b16 %v785
          %v826 = vunpack.c.h.b16 %v785
          %v827 = vunpack.c.l.b16 %v786
          %v828 = vunpack.c.h.b16 %v786
          %v829 = vunpack.c.l.b16 %v787
          %v830 = vunpack.c.h.b16 %v787
          %v831 = vunpack.c.l.b16 %v788
          %v832 = vunpack.c.h.b16 %v788
          %v833 = vunpack.c.l.b16 %v789
          %v834 = vunpack.c.h.b16 %v789
          %v835 = vunpack.c.l.b16 %v790
          %v836 = vunpack.c.h.b16 %v790
          %v837 = vunpack.c.l.b16 %v791
          %v838 = vunpack.c.h.b16 %v791
          %v839 = vunpack.c.l.b16 %v792
          %v840 = vunpack.c.h.b16 %v792
          %v841 = vpack.c.b16 %v809, %v809
          %v842 = vpack.c.b16 %v810, %v810
          %v843 = vpack.c.b16 %v811, %v811
          %v844 = vpack.c.b16 %v812, %v812
          %v845 = vpack.c.b16 %v813, %v813
          %v846 = vpack.c.b16 %v814, %v814
          %v847 = vpack.c.b16 %v815, %v815
          %v848 = vpack.c.b16 %v816, %v816
          %v849 = vpack.c.b16 %v817, %v817
          %v850 = vpack.c.b16 %v818, %v818
          %v851 = vpack.c.b16 %v819, %v819
          %v852 = vpack.c.b16 %v820, %v820
          %v853 = vpack.c.b16 %v821, %v821
          %v854 = vpack.c.b16 %v822, %v822
          %v855 = vpack.c.b16 %v823, %v823
          %v856 = vpack.c.b16 %v824, %v824
          %v857 = vpack.c.b16 %v825, %v825
          %v858 = vpack.c.b16 %v826, %v826
          %v859 = vpack.c.b16 %v827, %v827
          %v860 = vpack.c.b16 %v828, %v828
          %v861 = vpack.c.b16 %v829, %v829
          %v862 = vpack.c.b16 %v830, %v830
          %v863 = vpack.c.b16 %v831, %v831
          %v864 = vpack.c.b16 %v832, %v832
          %v865 = vpack.c.b16 %v833, %v833
          %v866 = vpack.c.b16 %v834, %v834
          %v867 = vpack.c.b16 %v835, %v835
          %v868 = vpack.c.b16 %v836, %v836
          %v869 = vpack.c.b16 %v837, %v837
          %v870 = vpack.c.b16 %v838, %v838
          %v871 = vpack.c.b16 %v839, %v839
          %v872 = vpack.c.b16 %v840, %v840
          %905 = vst [vmem:[%s208] sm:$0xf] %v841
          %906 = vst [vmem:[%s208 + $0x4] sm:$0xf] %v842
          %907 = vst [vmem:[%s208 + $0x8] sm:$0xf] %v843
          %908 = vst [vmem:[%s208 + $0xc] sm:$0xf] %v844
          %909 = vst [vmem:[%s208 + $0x10] sm:$0xf] %v845
          %910 = vst [vmem:[%s208 + $0x14] sm:$0xf] %v846
          %911 = vst [vmem:[%s208 + $0x18] sm:$0xf] %v847
          %912 = vst [vmem:[%s208 + $0x1c] sm:$0xf] %v848
          %913 = vst [vmem:[%s208 + $0x20] sm:$0xf] %v849
          %914 = vst [vmem:[%s208 + $0x24] sm:$0xf] %v850
          %915 = vst [vmem:[%s208 + $0x28] sm:$0xf] %v851
          %916 = vst [vmem:[%s208 + $0x2c] sm:$0xf] %v852
          %917 = vst [vmem:[%s208 + $0x30] sm:$0xf] %v853
          %918 = vst [vmem:[%s208 + $0x34] sm:$0xf] %v854
          %919 = vst [vmem:[%s208 + $0x38] sm:$0xf] %v855
          %920 = vst [vmem:[%s208 + $0x3c] sm:$0xf] %v856
          %921 = vst [vmem:[%s208 + $0x40] sm:$0xf] %v857
          %922 = vst [vmem:[%s208 + $0x44] sm:$0xf] %v858
          %923 = vst [vmem:[%s208 + $0x48] sm:$0xf] %v859
          %924 = vst [vmem:[%s208 + $0x4c] sm:$0xf] %v860
          %925 = vst [vmem:[%s208 + $0x50] sm:$0xf] %v861
          %926 = vst [vmem:[%s208 + $0x54] sm:$0xf] %v862
          %927 = vst [vmem:[%s208 + $0x58] sm:$0xf] %v863
          %928 = vst [vmem:[%s208 + $0x5c] sm:$0xf] %v864
          %929 = vst [vmem:[%s208 + $0x60] sm:$0xf] %v865
          %930 = vst [vmem:[%s208 + $0x64] sm:$0xf] %v866
          %931 = vst [vmem:[%s208 + $0x68] sm:$0xf] %v867
          %932 = vst [vmem:[%s208 + $0x6c] sm:$0xf] %v868
          %933 = vst [vmem:[%s208 + $0x70] sm:$0xf] %v869
          %934 = vst [vmem:[%s208 + $0x74] sm:$0xf] %v870
          %935 = vst [vmem:[%s208 + $0x78] sm:$0xf] %v871
          %936 = vst [vmem:[%s208 + $0x7c] sm:$0xf] %v872
        $region40: #{conv_layer.1} parent=31 // pred_fallthru
          _
        %s937 = sand.u32 %s109, 1
        %s938 = sand.u32 %s109, 1
        %s939 = smul.addr %s938, 128
        %s940 = scalar_lea.vmem [#allocation3], %s939
        // Predicated region
        $region41: #{conv_layer.1} parent=31 // pred_check
          %p941 = pneg %p119
        $region42: #{conv_layer.1} parent=31 // pred_check_branch
          %943 = sbr.rel (%p941) target = $region44
        $region43: #{conv_layer.1} parent=31 // pred_region
          %s944 = smul.u32 32, %s18
          %s945 = ssub.s32 63, %s944
          %p946 = scmp.lt.s32.totalorder %s945, 32
          %s947 = scalar_select %p946, %s945, 32
          %s948 = smul.u32 64, %s947
          %p949 = scmp.ne.s32.totalorder 0, %s948
          %s950 = smul.addr %s944, 4
          %s951 = scalar_lea.vmem %s3, %s950
          // Predicated region
          $region45: #{conv_layer.1} parent=43 // pred_check
            %p952 = pneg %p949
          $region46: #{conv_layer.1} parent=43 // pred_check_branch
            %954 = sbr.rel (%p952) target = $region48
          $region47: #{conv_layer.1} parent=43 // pred_region
            // Predicated region
            $region49: #{conv_layer.1} parent=47 // pred_check
              _
            $region50: #{conv_layer.1} parent=47 // pred_check_branch
              %956 = sbr.rel target = $region52
            $region51: #{conv_layer.1} parent=47 // pred_region
              // Predicated region
              $region71: #{conv_layer.1} parent=51 // pred_check
                _
              $region72: #{conv_layer.1} parent=51 // pred_check_branch
                %1067 = sbr.rel (0) target = $region74
              $region73: #{conv_layer.1} parent=51 // pred_region
                %s1069 = sshrl.u32 %s947, 5
                // While loop
                $region75: #{conv_layer.1} parent=73 // loop_pre_header
                  _
                $region76: #{conv_layer.1} parent=73 // loop_header
                  %s1071 = sphi 0, %s1073
                  %p1072 = scmp.ge.s32.totalorder %s1071, %s1069
                  %s1076 = sphi 0, %s1145
                  %s1077 = sphi %s940, %s1148
                  %s1078 = sphi %s951, %s1149
                $region77: #{conv_layer.1} parent=73 // loop_header_branch
                  %1075 = sbr.rel (%p1072) target = $region81
                $region78: #{conv_layer.1} parent=73 // loop_body
                  %v1079 = vld [vmem:[%s1077] sm:$0xf]
                  %1080 = vst [vmem:[%s1078] sm:$0xf] %v1079
                  %v1081 = vld [vmem:[%s1077 + $0x4] sm:$0xf]
                  %1082 = vst [vmem:[%s1078 + $0x4] sm:$0xf] %v1081
                  %v1083 = vld [vmem:[%s1077 + $0x8] sm:$0xf]
                  %1084 = vst [vmem:[%s1078 + $0x8] sm:$0xf] %v1083
                  %v1085 = vld [vmem:[%s1077 + $0xc] sm:$0xf]
                  %1086 = vst [vmem:[%s1078 + $0xc] sm:$0xf] %v1085
                  %v1087 = vld [vmem:[%s1077 + $0x10] sm:$0xf]
                  %1088 = vst [vmem:[%s1078 + $0x10] sm:$0xf] %v1087
                  %v1089 = vld [vmem:[%s1077 + $0x14] sm:$0xf]
                  %1090 = vst [vmem:[%s1078 + $0x14] sm:$0xf] %v1089
                  %v1091 = vld [vmem:[%s1077 + $0x18] sm:$0xf]
                  %1092 = vst [vmem:[%s1078 + $0x18] sm:$0xf] %v1091
                  %v1093 = vld [vmem:[%s1077 + $0x1c] sm:$0xf]
                  %1094 = vst [vmem:[%s1078 + $0x1c] sm:$0xf] %v1093
                  %v1095 = vld [vmem:[%s1077 + $0x20] sm:$0xf]
                  %1096 = vst [vmem:[%s1078 + $0x20] sm:$0xf] %v1095
                  %v1097 = vld [vmem:[%s1077 + $0x24] sm:$0xf]
                  %1098 = vst [vmem:[%s1078 + $0x24] sm:$0xf] %v1097
                  %v1099 = vld [vmem:[%s1077 + $0x28] sm:$0xf]
                  %1100 = vst [vmem:[%s1078 + $0x28] sm:$0xf] %v1099
                  %v1101 = vld [vmem:[%s1077 + $0x2c] sm:$0xf]
                  %1102 = vst [vmem:[%s1078 + $0x2c] sm:$0xf] %v1101
                  %v1103 = vld [vmem:[%s1077 + $0x30] sm:$0xf]
                  %1104 = vst [vmem:[%s1078 + $0x30] sm:$0xf] %v1103
                  %v1105 = vld [vmem:[%s1077 + $0x34] sm:$0xf]
                  %1106 = vst [vmem:[%s1078 + $0x34] sm:$0xf] %v1105
                  %v1107 = vld [vmem:[%s1077 + $0x38] sm:$0xf]
                  %1108 = vst [vmem:[%s1078 + $0x38] sm:$0xf] %v1107
                  %v1109 = vld [vmem:[%s1077 + $0x3c] sm:$0xf]
                  %1110 = vst [vmem:[%s1078 + $0x3c] sm:$0xf] %v1109
                  %v1111 = vld [vmem:[%s1077 + $0x40] sm:$0xf]
                  %1112 = vst [vmem:[%s1078 + $0x40] sm:$0xf] %v1111
                  %v1113 = vld [vmem:[%s1077 + $0x44] sm:$0xf]
                  %1114 = vst [vmem:[%s1078 + $0x44] sm:$0xf] %v1113
                  %v1115 = vld [vmem:[%s1077 + $0x48] sm:$0xf]
                  %1116 = vst [vmem:[%s1078 + $0x48] sm:$0xf] %v1115
                  %v1117 = vld [vmem:[%s1077 + $0x4c] sm:$0xf]
                  %1118 = vst [vmem:[%s1078 + $0x4c] sm:$0xf] %v1117
                  %v1119 = vld [vmem:[%s1077 + $0x50] sm:$0xf]
                  %1120 = vst [vmem:[%s1078 + $0x50] sm:$0xf] %v1119
                  %v1121 = vld [vmem:[%s1077 + $0x54] sm:$0xf]
                  %1122 = vst [vmem:[%s1078 + $0x54] sm:$0xf] %v1121
                  %v1123 = vld [vmem:[%s1077 + $0x58] sm:$0xf]
                  %1124 = vst [vmem:[%s1078 + $0x58] sm:$0xf] %v1123
                  %v1125 = vld [vmem:[%s1077 + $0x5c] sm:$0xf]
                  %1126 = vst [vmem:[%s1078 + $0x5c] sm:$0xf] %v1125
                  %v1127 = vld [vmem:[%s1077 + $0x60] sm:$0xf]
                  %1128 = vst [vmem:[%s1078 + $0x60] sm:$0xf] %v1127
                  %v1129 = vld [vmem:[%s1077 + $0x64] sm:$0xf]
                  %1130 = vst [vmem:[%s1078 + $0x64] sm:$0xf] %v1129
                  %v1131 = vld [vmem:[%s1077 + $0x68] sm:$0xf]
                  %1132 = vst [vmem:[%s1078 + $0x68] sm:$0xf] %v1131
                  %v1133 = vld [vmem:[%s1077 + $0x6c] sm:$0xf]
                  %1134 = vst [vmem:[%s1078 + $0x6c] sm:$0xf] %v1133
                  %v1135 = vld [vmem:[%s1077 + $0x70] sm:$0xf]
                  %1136 = vst [vmem:[%s1078 + $0x70] sm:$0xf] %v1135
                  %v1137 = vld [vmem:[%s1077 + $0x74] sm:$0xf]
                  %1138 = vst [vmem:[%s1078 + $0x74] sm:$0xf] %v1137
                  %v1139 = vld [vmem:[%s1077 + $0x78] sm:$0xf]
                  %1140 = vst [vmem:[%s1078 + $0x78] sm:$0xf] %v1139
                  %v1141 = vld [vmem:[%s1077 + $0x7c] sm:$0xf]
                  %1142 = vst [vmem:[%s1078 + $0x7c] sm:$0xf] %v1141
                  %s1143 = sadd.s32 1, %s1076
                  %p1144 = scmp.ge.s32.totalorder %s1143, %s1069
                  %s1145 = scalar_select %p1144, 0, %s1143
                  %s1146 = smul.u32 %s1145, 128
                  %s1147 = smul.u32 %s1145, 128
                  %s1148 = scalar_lea.vmem %s940, %s1146 [#allocation3]
                  %s1149 = scalar_lea.vmem %s951, %s1147
                $region79: #{conv_layer.1} parent=73 // loop_footer
                  %s1073 = sadd.s32 %s1071, 1
                $region80: #{conv_layer.1} parent=73 // loop_footer_branch
                  %1070 = sbr.rel target = $region76
                $region81: #{conv_layer.1} parent=73 // loop_exit
                  _
                %s1150 = sshrl.u32 %s947, 5
                %s1151 = sand.u32 %s947, 31
                %s1152 = smul.u32 %s1150, 32
                %s1153 = smul.u32 4, %s1152
                %s1154 = scalar_lea.vmem %s940, %s1153 [#allocation3]
                %s1155 = smul.u32 4, %s1152
                %s1156 = scalar_lea.vmem %s951, %s1155
                // While loop
                $region82: #{conv_layer.1} parent=73 // loop_pre_header
                  _
                $region83: #{conv_layer.1} parent=73 // loop_header
                  %s1158 = sphi 0, %s1160
                  %p1159 = scmp.ge.s32.totalorder %s1158, %s1151
                  %s1163 = sphi 0, %s1170
                  %s1164 = sphi %s1154, %s1173
                  %s1165 = sphi %s1156, %s1174
                $region84: #{conv_layer.1} parent=73 // loop_header_branch
                  %1162 = sbr.rel (%p1159) target = $region88
                $region85: #{conv_layer.1} parent=73 // loop_body
                  %v1166 = vld [vmem:[%s1164] sm:$0xf]
                  %1167 = vst [vmem:[%s1165] sm:$0xf] %v1166
                  %s1168 = sadd.s32 1, %s1163
                  %p1169 = scmp.ge.s32.totalorder %s1168, %s1151
                  %s1170 = scalar_select %p1169, 0, %s1168
                  %s1171 = smul.u32 %s1170, 4
                  %s1172 = smul.u32 %s1170, 4
                  %s1173 = scalar_lea.vmem %s1154, %s1171 [#allocation3]
                  %s1174 = scalar_lea.vmem %s1156, %s1172
                $region86: #{conv_layer.1} parent=73 // loop_footer
                  %s1160 = sadd.s32 %s1158, 1
                $region87: #{conv_layer.1} parent=73 // loop_footer_branch
                  %1157 = sbr.rel target = $region83
                $region88: #{conv_layer.1} parent=73 // loop_exit
                  _
              $region74: #{conv_layer.1} parent=51 // pred_fallthru
                _
            $region52: #{conv_layer.1} parent=47 // pred_fallthru
              _
            // Predicated region
            $region53: #{conv_layer.1} parent=47 // pred_check
              _
            $region54: #{conv_layer.1} parent=47 // pred_check_branch
              %958 = sbr.rel (0) target = $region56
            $region55: #{conv_layer.1} parent=47 // pred_region
              %s960 = sshrl.u32 %s947, 5
              // While loop
              $region57: #{conv_layer.1} parent=55 // loop_pre_header
                _
              $region58: #{conv_layer.1} parent=55 // loop_header
                %s962 = sphi 0, %s964
                %p963 = scmp.ge.s32.totalorder %s962, %s960
                %s967 = sphi 0, %s1036
                %s968 = sphi %s940, %s1039
                %s969 = sphi %s951, %s1040
              $region59: #{conv_layer.1} parent=55 // loop_header_branch
                %966 = sbr.rel (%p963) target = $region63
              $region60: #{conv_layer.1} parent=55 // loop_body
                %v970 = vld [vmem:[%s968] sm:$0xf]
                %971 = vst [vmem:[%s969] sm:$0xf] %v970
                %v972 = vld [vmem:[%s968 + $0x4] sm:$0xf]
                %973 = vst [vmem:[%s969 + $0x4] sm:$0xf] %v972
                %v974 = vld [vmem:[%s968 + $0x8] sm:$0xf]
                %975 = vst [vmem:[%s969 + $0x8] sm:$0xf] %v974
                %v976 = vld [vmem:[%s968 + $0xc] sm:$0xf]
                %977 = vst [vmem:[%s969 + $0xc] sm:$0xf] %v976
                %v978 = vld [vmem:[%s968 + $0x10] sm:$0xf]
                %979 = vst [vmem:[%s969 + $0x10] sm:$0xf] %v978
                %v980 = vld [vmem:[%s968 + $0x14] sm:$0xf]
                %981 = vst [vmem:[%s969 + $0x14] sm:$0xf] %v980
                %v982 = vld [vmem:[%s968 + $0x18] sm:$0xf]
                %983 = vst [vmem:[%s969 + $0x18] sm:$0xf] %v982
                %v984 = vld [vmem:[%s968 + $0x1c] sm:$0xf]
                %985 = vst [vmem:[%s969 + $0x1c] sm:$0xf] %v984
                %v986 = vld [vmem:[%s968 + $0x20] sm:$0xf]
                %987 = vst [vmem:[%s969 + $0x20] sm:$0xf] %v986
                %v988 = vld [vmem:[%s968 + $0x24] sm:$0xf]
                %989 = vst [vmem:[%s969 + $0x24] sm:$0xf] %v988
                %v990 = vld [vmem:[%s968 + $0x28] sm:$0xf]
                %991 = vst [vmem:[%s969 + $0x28] sm:$0xf] %v990
                %v992 = vld [vmem:[%s968 + $0x2c] sm:$0xf]
                %993 = vst [vmem:[%s969 + $0x2c] sm:$0xf] %v992
                %v994 = vld [vmem:[%s968 + $0x30] sm:$0xf]
                %995 = vst [vmem:[%s969 + $0x30] sm:$0xf] %v994
                %v996 = vld [vmem:[%s968 + $0x34] sm:$0xf]
                %997 = vst [vmem:[%s969 + $0x34] sm:$0xf] %v996
                %v998 = vld [vmem:[%s968 + $0x38] sm:$0xf]
                %999 = vst [vmem:[%s969 + $0x38] sm:$0xf] %v998
                %v1000 = vld [vmem:[%s968 + $0x3c] sm:$0xf]
                %1001 = vst [vmem:[%s969 + $0x3c] sm:$0xf] %v1000
                %v1002 = vld [vmem:[%s968 + $0x40] sm:$0xf]
                %1003 = vst [vmem:[%s969 + $0x40] sm:$0xf] %v1002
                %v1004 = vld [vmem:[%s968 + $0x44] sm:$0xf]
                %1005 = vst [vmem:[%s969 + $0x44] sm:$0xf] %v1004
                %v1006 = vld [vmem:[%s968 + $0x48] sm:$0xf]
                %1007 = vst [vmem:[%s969 + $0x48] sm:$0xf] %v1006
                %v1008 = vld [vmem:[%s968 + $0x4c] sm:$0xf]
                %1009 = vst [vmem:[%s969 + $0x4c] sm:$0xf] %v1008
                %v1010 = vld [vmem:[%s968 + $0x50] sm:$0xf]
                %1011 = vst [vmem:[%s969 + $0x50] sm:$0xf] %v1010
                %v1012 = vld [vmem:[%s968 + $0x54] sm:$0xf]
                %1013 = vst [vmem:[%s969 + $0x54] sm:$0xf] %v1012
                %v1014 = vld [vmem:[%s968 + $0x58] sm:$0xf]
                %1015 = vst [vmem:[%s969 + $0x58] sm:$0xf] %v1014
                %v1016 = vld [vmem:[%s968 + $0x5c] sm:$0xf]
                %1017 = vst [vmem:[%s969 + $0x5c] sm:$0xf] %v1016
                %v1018 = vld [vmem:[%s968 + $0x60] sm:$0xf]
                %1019 = vst [vmem:[%s969 + $0x60] sm:$0xf] %v1018
                %v1020 = vld [vmem:[%s968 + $0x64] sm:$0xf]
                %1021 = vst [vmem:[%s969 + $0x64] sm:$0xf] %v1020
                %v1022 = vld [vmem:[%s968 + $0x68] sm:$0xf]
                %1023 = vst [vmem:[%s969 + $0x68] sm:$0xf] %v1022
                %v1024 = vld [vmem:[%s968 + $0x6c] sm:$0xf]
                %1025 = vst [vmem:[%s969 + $0x6c] sm:$0xf] %v1024
                %v1026 = vld [vmem:[%s968 + $0x70] sm:$0xf]
                %1027 = vst [vmem:[%s969 + $0x70] sm:$0xf] %v1026
                %v1028 = vld [vmem:[%s968 + $0x74] sm:$0xf]
                %1029 = vst [vmem:[%s969 + $0x74] sm:$0xf] %v1028
                %v1030 = vld [vmem:[%s968 + $0x78] sm:$0xf]
                %1031 = vst [vmem:[%s969 + $0x78] sm:$0xf] %v1030
                %v1032 = vld [vmem:[%s968 + $0x7c] sm:$0xf]
                %1033 = vst [vmem:[%s969 + $0x7c] sm:$0xf] %v1032
                %s1034 = sadd.s32 1, %s967
                %p1035 = scmp.ge.s32.totalorder %s1034, %s960
                %s1036 = scalar_select %p1035, 0, %s1034
                %s1037 = smul.u32 %s1036, 128
                %s1038 = smul.u32 %s1036, 128
                %s1039 = scalar_lea.vmem %s940, %s1037 [#allocation3]
                %s1040 = scalar_lea.vmem %s951, %s1038
              $region61: #{conv_layer.1} parent=55 // loop_footer
                %s964 = sadd.s32 %s962, 1
              $region62: #{conv_layer.1} parent=55 // loop_footer_branch
                %961 = sbr.rel target = $region58
              $region63: #{conv_layer.1} parent=55 // loop_exit
                _
              %s1041 = sshrl.u32 %s947, 5
              %s1042 = sand.u32 %s947, 31
              %s1043 = smul.u32 %s1041, 32
              %s1044 = smul.u32 4, %s1043
              %s1045 = scalar_lea.vmem %s940, %s1044 [#allocation3]
              %s1046 = smul.u32 4, %s1043
              %s1047 = scalar_lea.vmem %s951, %s1046
              // While loop
              $region64: #{conv_layer.1} parent=55 // loop_pre_header
                _
              $region65: #{conv_layer.1} parent=55 // loop_header
                %s1049 = sphi 0, %s1051
                %p1050 = scmp.ge.s32.totalorder %s1049, %s1042
                %s1054 = sphi 0, %s1061
                %s1055 = sphi %s1045, %s1064
                %s1056 = sphi %s1047, %s1065
              $region66: #{conv_layer.1} parent=55 // loop_header_branch
                %1053 = sbr.rel (%p1050) target = $region70
              $region67: #{conv_layer.1} parent=55 // loop_body
                %v1057 = vld [vmem:[%s1055] sm:$0xf]
                %1058 = vst [vmem:[%s1056] sm:$0xf] %v1057
                %s1059 = sadd.s32 1, %s1054
                %p1060 = scmp.ge.s32.totalorder %s1059, %s1042
                %s1061 = scalar_select %p1060, 0, %s1059
                %s1062 = smul.u32 %s1061, 4
                %s1063 = smul.u32 %s1061, 4
                %s1064 = scalar_lea.vmem %s1045, %s1062 [#allocation3]
                %s1065 = scalar_lea.vmem %s1047, %s1063
              $region68: #{conv_layer.1} parent=55 // loop_footer
                %s1051 = sadd.s32 %s1049, 1
              $region69: #{conv_layer.1} parent=55 // loop_footer_branch
                %1048 = sbr.rel target = $region65
              $region70: #{conv_layer.1} parent=55 // loop_exit
                _
            $region56: #{conv_layer.1} parent=47 // pred_fallthru
              _
          $region48: #{conv_layer.1} parent=43 // pred_fallthru
            _
          %1175 = vnop
        $region44: #{conv_layer.1} parent=31 // pred_fallthru
          _
      $region32: #{conv_layer.1} parent=5 // pred_fallthru
        _
      %p1176 = scmp.le.s32.totalorder 2, %s9
      // Predicated region
      $region89: #{conv_layer.1} parent=5 // pred_check
        %p1177 = pneg %p1176
      $region90: #{conv_layer.1} parent=5 // pred_check_branch
        %1179 = sbr.rel (%p1177) target = $region92
      $region91: #{conv_layer.1} parent=5 // pred_region
        %s1180 = ssub.s32 %s9, 2
        // Predicated region
        $region93: #{conv_layer.1} parent=91 // pred_check
          %p1181 = pneg %p125
        $region94: #{conv_layer.1} parent=91 // pred_check_branch
          %1183 = sbr.rel (%p1181) target = $region96
        $region95: #{conv_layer.1} parent=91 // pred_region
          %s1184 = sand.u32 %s110, 1
          %s1185 = sand.u32 %s110, 1
          %s1186 = smul.addr %s1185, 128
          %s1187 = scalar_lea.vmem [#allocation3], %s1186
        $region96: #{conv_layer.1} parent=91 // pred_fallthru
          _
      $region92: #{conv_layer.1} parent=5 // pred_fallthru
        _
    $region6: #{conv_layer.1} parent=1 // loop_footer
      %s13 = sadd.s32 1, %s9
    $region7: #{conv_layer.1} parent=1 // loop_footer_branch
      %8 = sbr.rel target = $region3
    $region8: #{conv_layer.1} parent=1 // loop_exit
      _

</llo_original>
